<compile_context>
chip_gen: v5e
topology: v5e:2x2
jax: 0.10.0
libtpu: 0.0.40
codegen_flags: <defaults>
</compile_context>

<pallas_src>
import math

import jax
import jax.numpy as jnp
from jax.experimental import pallas as pl
from jax.experimental.pallas import tpu as pltpu


# ----------------------------------------------------------------------------
# Model configuration (mirrors AutoEncoder.__init__)
# ----------------------------------------------------------------------------
SEQ_LEN = 128          # sequence_length
COMPRESS_RATIO = 16    # compress_ratio -> num_layer = 4
BATCH = 128            # demo batch (raised per perf review; wrapper handles any B)


def _num_layers(compress_ratio):
    n = 1
    while compress_ratio // (2 ** n) != 1:
        n += 1
    return n


NUM_LAYER = _num_layers(COMPRESS_RATIO)   # = 4 for compress_ratio=16

# encoder dims: seq -> seq/2 -> ... -> seq/2^num_layer
ENC_DIMS = [(SEQ_LEN // 2 ** i, SEQ_LEN // 2 ** (i + 1)) for i in range(NUM_LAYER)]
# decoder dims: seq/2^num_layer -> ... -> seq
DEC_DIMS = [(SEQ_LEN // 2 ** (NUM_LAYER - i), SEQ_LEN // 2 ** (NUM_LAYER - i - 1))
            for i in range(NUM_LAYER)]
ALL_DIMS = ENC_DIMS + DEC_DIMS            # 2*NUM_LAYER (in, out) pairs
N_BLOCKS = len(ALL_DIMS)                  # 8
LATENT_DIM = SEQ_LEN // 2 ** NUM_LAYER    # 8 (output of last encoder block)
PAD = SEQ_LEN                             # 128: lane-dense width for every packed layer


# ----------------------------------------------------------------------------
# Pallas kernel: full encoder/decoder chain on one packed weight/bias slab
# ----------------------------------------------------------------------------
def autoencoder_kernel(x_ref, w_ref, b_ref, out_ref):
    """x_ref: (TM, 128) f32.  w_ref: (8, 128, 128) bf16 zero-padded.
    b_ref: (8, 128) f32 (zero in padded lanes).
    out_ref: (2, TM, 128) f32 -- [0]=padded latent, [1]=recon."""
    h = x_ref[...].astype(jnp.float32)
    for i in range(N_BLOCKS):
        w = w_ref[i]                  # (128, 128) bf16, zero-padded weight slab
        b = b_ref[i:i + 1, :]         # (1, 128) f32, zero in padded lanes
        # bf16 operands -> full-rate MXU pass; f32 accumulation / bias / ReLU.
        h = jnp.dot(h.astype(jnp.bfloat16), w,
                    preferred_element_type=jnp.float32) + b
        h = jnp.maximum(h, 0.0)       # ReLU (padded lanes stay exactly 0)
        if i == NUM_LAYER - 1:        # end of encoder -> lane-dense padded latent
            out_ref[0, :, :] = h.astype(out_ref.dtype)
    out_ref[1, :, :] = h.astype(out_ref.dtype)


# ----------------------------------------------------------------------------
# Parameter packing: 8 layers -> one weight slab + one bias slab
# ----------------------------------------------------------------------------
def pack_params(weights, biases):
    w_slab = jnp.zeros((N_BLOCKS, PAD, PAD), jnp.float32)
    b_slab = jnp.zeros((N_BLOCKS, PAD), jnp.float32)
    for i, (w, b) in enumerate(zip(weights, biases)):
        din, dout = w.shape
        w_slab = w_slab.at[i, :din, :dout].set(w)     # real block in top-left
        b_slab = b_slab.at[i, :dout].set(b.reshape(-1))
    return w_slab.astype(jnp.bfloat16), b_slab        # bf16 weights halve DMA bytes


# ----------------------------------------------------------------------------
# Wrapper
# ----------------------------------------------------------------------------
def autoencoder_forward(x, w_slab, b_slab):
    """x: (B, SEQ_LEN) f32 -> (latent (B, LATENT_DIM), recon (B, SEQ_LEN))."""
    B = x.shape[0]

    # Row tile: 64 rows/step once the batch is big enough so the parallel grid
    # axis can spread rows over both v7x TensorCores; otherwise a single step.
    if B > 64:
        TM = 64
    else:
        TM = max(8, ((B + 7) // 8) * 8)
    B_pad = ((B + TM - 1) // TM) * TM
    if B_pad != B:
        x = jnp.pad(x, ((0, B_pad - B), (0, 0)))      # zero rows, sliced off below
    grid = (B_pad // TM,)

    out = pl.pallas_call(
        autoencoder_kernel,
        out_shape=jax.ShapeDtypeStruct((2, B_pad, PAD), jnp.float32),
        grid=grid,
        in_specs=[
            pl.BlockSpec((TM, SEQ_LEN), lambda i: (i, 0)),           # batch-tiled input
            pl.BlockSpec((N_BLOCKS, PAD, PAD), lambda i: (0, 0, 0)),  # weight slab (resident)
            pl.BlockSpec((N_BLOCKS, PAD), lambda i: (0, 0)),          # bias slab (resident)
        ],
        out_specs=pl.BlockSpec((2, TM, PAD), lambda i: (0, i, 0)),    # lane-dense merged output
        compiler_params=pltpu.CompilerParams(
            dimension_semantics=("parallel",)),
    )(x, w_slab, b_slab)

    latent = out[0, :B, :LATENT_DIM]   # slice padded slab back to real widths (layout plumbing)
    recon = out[1, :B, :SEQ_LEN]
    return latent, recon


# ----------------------------------------------------------------------------
# Deterministic parameter init (PyTorch-style uniform(-1/sqrt(in), 1/sqrt(in)))
# ----------------------------------------------------------------------------
def init_params(key):
    weights, biases = [], []
    for (din, dout) in ALL_DIMS:
        key, kw, kb = jax.random.split(key, 3)
        bound = 1.0 / math.sqrt(din)
        # stored as (in, out) == PyTorch W.T so the kernel does x @ W
        w = jax.random.uniform(kw, (din, dout), jnp.float32, -bound, bound)
        b = jax.random.uniform(kb, (dout,), jnp.float32, -bound, bound)
        weights.append(w)
        biases.append(b)
    return weights, biases


def reference_forward(x, weights, biases, mxu_dtype=None):
    """Pure-JAX reference of the PyTorch forward. mxu_dtype=bf16 emulates the kernel's
    mixed-precision matmuls for a tight comparison."""
    h = x
    latent = None
    for i, (w, b) in enumerate(zip(weights, biases)):
        if mxu_dtype is not None:
            y = jnp.dot(h.astype(mxu_dtype), w.astype(mxu_dtype),
                        preferred_element_type=jnp.float32)
        else:
            y = jnp.dot(h, w, preferred_element_type=jnp.float32)
        h = jnp.maximum(y + b, 0.0)
        if i == NUM_LAYER - 1:
            latent = h
    return latent, h


if __name__ == "__main__":
    key = jax.random.PRNGKey(0)
    key, kx = jax.random.split(key)
    x = jax.random.normal(kx, (BATCH, SEQ_LEN), jnp.float32)

    weights, biases = init_params(key)
    w_slab, b_slab = pack_params(weights, biases)

    latent, recon = autoencoder_forward(x, w_slab, b_slab)
    latent = jax.block_until_ready(latent)
    recon = jax.block_until_ready(recon)

    assert latent.shape == (BATCH, LATENT_DIM)
    assert recon.shape == (BATCH, SEQ_LEN)

    # Tight check vs a bf16-MXU-emulating JAX reference (same casting as the kernel).
    lat_bf, rec_bf = reference_forward(x, weights, biases, mxu_dtype=jnp.bfloat16)
    assert jnp.allclose(latent, lat_bf, atol=1e-2, rtol=1e-2)
    assert jnp.allclose(recon, rec_bf, atol=1e-2, rtol=1e-2)

    # Loose check vs the full-f32 PyTorch-equivalent reference (bf16 MXU tolerance).
    lat_f32, rec_f32 = reference_forward(x, weights, biases)
    assert jnp.allclose(latent, lat_f32, atol=5e-2, rtol=5e-2)
    assert jnp.allclose(recon, rec_f32, atol=5e-2, rtol=5e-2)

    print("KERNEL_OK")
</pallas_src>

<mosaic_0001>
module attributes {stable_mosaic.version = 11 : i64} {
  func.func @autoencoder_kernel(%arg0: i32, %arg1: memref<64x128xf32, #tpu.memory_space<vmem>>, %arg2: memref<8x128x128xbf16, #tpu.memory_space<vmem>>, %arg3: memref<8x128xf32, #tpu.memory_space<vmem>>, %arg4: memref<2x64x128xf32, #tpu.memory_space<vmem>>) attributes {dimension_semantics = [#tpu.dimension_semantics<parallel>], iteration_bounds = array<i64: 2>, scalar_prefetch = 0 : i64, scratch_operands = 0 : i64, tpu.core_type = #tpu.core_type<tc>, window_params = [{transform_indices = @transform_0, window_bounds = array<i64: 64, 128>}, {pipeline_mode = #tpu.pipeline_mode<synchronous>, transform_indices = @transform_1, window_bounds = array<i64: 8, 128, 128>}, {pipeline_mode = #tpu.pipeline_mode<synchronous>, transform_indices = @transform_2, window_bounds = array<i64: 8, 128>}, {transform_indices = @transform_3, window_bounds = array<i64: 2, 64, 128>}]} {
    %c0 = arith.constant 0 : index
    %c0_0 = arith.constant 0 : index
    %0 = vector.load %arg1[%c0, %c0_0] : memref<64x128xf32, #tpu.memory_space<vmem>>, vector<64x128xf32>
    %c0_1 = arith.constant 0 : index
    %c0_2 = arith.constant 0 : index
    %c0_3 = arith.constant 0 : index
    %1 = vector.load %arg2[%c0_1, %c0_2, %c0_3] : memref<8x128x128xbf16, #tpu.memory_space<vmem>>, vector<1x128x128xbf16>
    %2 = vector.shape_cast %1 : vector<1x128x128xbf16> to vector<128x128xbf16>
    %c0_4 = arith.constant 0 : index
    %c0_5 = arith.constant 0 : index
    %3 = vector.load %arg3[%c0_4, %c0_5] : memref<8x128xf32, #tpu.memory_space<vmem>>, vector<1x128xf32>
    %4 = arith.truncf %0 : vector<64x128xf32> to vector<64x128xbf16>
    %cst = arith.constant dense<0.000000e+00> : vector<64x128xf32>
    %5 = tpu.matmul %4, %2, %cst {dimension_numbers = #tpu.dot_dimension_numbers<[1], [0], [0], [1], [0, 0, 1, 1], [], []>} : vector<64x128xbf16>, vector<128x128xbf16>, vector<64x128xf32> -> vector<64x128xf32>
    %6 = vector.broadcast %3 : vector<1x128xf32> to vector<64x128xf32>
    %7 = arith.addf %5, %6 : vector<64x128xf32>
    %cst_6 = arith.constant 0.000000e+00 : f32
    %8 = vector.broadcast %cst_6 : f32 to vector<64x128xf32>
    %9 = arith.maximumf %7, %8 : vector<64x128xf32>
    %c1 = arith.constant 1 : index
    %c0_7 = arith.constant 0 : index
    %c0_8 = arith.constant 0 : index
    %10 = vector.load %arg2[%c1, %c0_7, %c0_8] : memref<8x128x128xbf16, #tpu.memory_space<vmem>>, vector<1x128x128xbf16>
    %11 = vector.shape_cast %10 : vector<1x128x128xbf16> to vector<128x128xbf16>
    %c1_9 = arith.constant 1 : index
    %c0_10 = arith.constant 0 : index
    %12 = vector.load %arg3[%c1_9, %c0_10] : memref<8x128xf32, #tpu.memory_space<vmem>>, vector<1x128xf32>
    %13 = arith.truncf %9 : vector<64x128xf32> to vector<64x128xbf16>
    %cst_11 = arith.constant dense<0.000000e+00> : vector<64x128xf32>
    %14 = tpu.matmul %13, %11, %cst_11 {dimension_numbers = #tpu.dot_dimension_numbers<[1], [0], [0], [1], [0, 0, 1, 1], [], []>} : vector<64x128xbf16>, vector<128x128xbf16>, vector<64x128xf32> -> vector<64x128xf32>
    %15 = vector.broadcast %12 : vector<1x128xf32> to vector<64x128xf32>
    %16 = arith.addf %14, %15 : vector<64x128xf32>
    %cst_12 = arith.constant 0.000000e+00 : f32
    %17 = vector.broadcast %cst_12 : f32 to vector<64x128xf32>
    %18 = arith.maximumf %16, %17 : vector<64x128xf32>
    %c2 = arith.constant 2 : index
    %c0_13 = arith.constant 0 : index
    %c0_14 = arith.constant 0 : index
    %19 = vector.load %arg2[%c2, %c0_13, %c0_14] : memref<8x128x128xbf16, #tpu.memory_space<vmem>>, vector<1x128x128xbf16>
    %20 = vector.shape_cast %19 : vector<1x128x128xbf16> to vector<128x128xbf16>
    %c2_15 = arith.constant 2 : index
    %c0_16 = arith.constant 0 : index
    %21 = vector.load %arg3[%c2_15, %c0_16] : memref<8x128xf32, #tpu.memory_space<vmem>>, vector<1x128xf32>
    %22 = arith.truncf %18 : vector<64x128xf32> to vector<64x128xbf16>
    %cst_17 = arith.constant dense<0.000000e+00> : vector<64x128xf32>
    %23 = tpu.matmul %22, %20, %cst_17 {dimension_numbers = #tpu.dot_dimension_numbers<[1], [0], [0], [1], [0, 0, 1, 1], [], []>} : vector<64x128xbf16>, vector<128x128xbf16>, vector<64x128xf32> -> vector<64x128xf32>
    %24 = vector.broadcast %21 : vector<1x128xf32> to vector<64x128xf32>
    %25 = arith.addf %23, %24 : vector<64x128xf32>
    %cst_18 = arith.constant 0.000000e+00 : f32
    %26 = vector.broadcast %cst_18 : f32 to vector<64x128xf32>
    %27 = arith.maximumf %25, %26 : vector<64x128xf32>
    %c3 = arith.constant 3 : index
    %c0_19 = arith.constant 0 : index
    %c0_20 = arith.constant 0 : index
    %28 = vector.load %arg2[%c3, %c0_19, %c0_20] : memref<8x128x128xbf16, #tpu.memory_space<vmem>>, vector<1x128x128xbf16>
    %29 = vector.shape_cast %28 : vector<1x128x128xbf16> to vector<128x128xbf16>
    %c3_21 = arith.constant 3 : index
    %c0_22 = arith.constant 0 : index
    %30 = vector.load %arg3[%c3_21, %c0_22] : memref<8x128xf32, #tpu.memory_space<vmem>>, vector<1x128xf32>
    %31 = arith.truncf %27 : vector<64x128xf32> to vector<64x128xbf16>
    %cst_23 = arith.constant dense<0.000000e+00> : vector<64x128xf32>
    %32 = tpu.matmul %31, %29, %cst_23 {dimension_numbers = #tpu.dot_dimension_numbers<[1], [0], [0], [1], [0, 0, 1, 1], [], []>} : vector<64x128xbf16>, vector<128x128xbf16>, vector<64x128xf32> -> vector<64x128xf32>
    %33 = vector.broadcast %30 : vector<1x128xf32> to vector<64x128xf32>
    %34 = arith.addf %32, %33 : vector<64x128xf32>
    %cst_24 = arith.constant 0.000000e+00 : f32
    %35 = vector.broadcast %cst_24 : f32 to vector<64x128xf32>
    %36 = arith.maximumf %34, %35 : vector<64x128xf32>
    %c0_25 = arith.constant 0 : index
    %c0_26 = arith.constant 0 : index
    %c0_27 = arith.constant 0 : index
    %37 = vector.load %arg4[%c0_25, %c0_26, %c0_27] : memref<2x64x128xf32, #tpu.memory_space<vmem>>, vector<1x64x128xf32>
    %38 = vector.shape_cast %37 : vector<1x64x128xf32> to vector<64x128xf32>
    %39 = vector.shape_cast %36 : vector<64x128xf32> to vector<1x64x128xf32>
    tpu.vector_store %arg4[%c0_25, %c0_26, %c0_27], %39 {strides = array<i32>} : memref<2x64x128xf32, #tpu.memory_space<vmem>>, vector<1x64x128xf32>,
    %c4 = arith.constant 4 : index
    %c0_28 = arith.constant 0 : index
    %c0_29 = arith.constant 0 : index
    %40 = vector.load %arg2[%c4, %c0_28, %c0_29] : memref<8x128x128xbf16, #tpu.memory_space<vmem>>, vector<1x128x128xbf16>
    %41 = vector.shape_cast %40 : vector<1x128x128xbf16> to vector<128x128xbf16>
    %c4_30 = arith.constant 4 : index
    %c0_31 = arith.constant 0 : index
    %42 = vector.load %arg3[%c4_30, %c0_31] : memref<8x128xf32, #tpu.memory_space<vmem>>, vector<1x128xf32>
    %43 = arith.truncf %36 : vector<64x128xf32> to vector<64x128xbf16>
    %cst_32 = arith.constant dense<0.000000e+00> : vector<64x128xf32>
    %44 = tpu.matmul %43, %41, %cst_32 {dimension_numbers = #tpu.dot_dimension_numbers<[1], [0], [0], [1], [0, 0, 1, 1], [], []>} : vector<64x128xbf16>, vector<128x128xbf16>, vector<64x128xf32> -> vector<64x128xf32>
    %45 = vector.broadcast %42 : vector<1x128xf32> to vector<64x128xf32>
    %46 = arith.addf %44, %45 : vector<64x128xf32>
    %cst_33 = arith.constant 0.000000e+00 : f32
    %47 = vector.broadcast %cst_33 : f32 to vector<64x128xf32>
    %48 = arith.maximumf %46, %47 : vector<64x128xf32>
    %c5 = arith.constant 5 : index
    %c0_34 = arith.constant 0 : index
    %c0_35 = arith.constant 0 : index
    %49 = vector.load %arg2[%c5, %c0_34, %c0_35] : memref<8x128x128xbf16, #tpu.memory_space<vmem>>, vector<1x128x128xbf16>
    %50 = vector.shape_cast %49 : vector<1x128x128xbf16> to vector<128x128xbf16>
    %c5_36 = arith.constant 5 : index
    %c0_37 = arith.constant 0 : index
    %51 = vector.load %arg3[%c5_36, %c0_37] : memref<8x128xf32, #tpu.memory_space<vmem>>, vector<1x128xf32>
    %52 = arith.truncf %48 : vector<64x128xf32> to vector<64x128xbf16>
    %cst_38 = arith.constant dense<0.000000e+00> : vector<64x128xf32>
    %53 = tpu.matmul %52, %50, %cst_38 {dimension_numbers = #tpu.dot_dimension_numbers<[1], [0], [0], [1], [0, 0, 1, 1], [], []>} : vector<64x128xbf16>, vector<128x128xbf16>, vector<64x128xf32> -> vector<64x128xf32>
    %54 = vector.broadcast %51 : vector<1x128xf32> to vector<64x128xf32>
    %55 = arith.addf %53, %54 : vector<64x128xf32>
    %cst_39 = arith.constant 0.000000e+00 : f32
    %56 = vector.broadcast %cst_39 : f32 to vector<64x128xf32>
    %57 = arith.maximumf %55, %56 : vector<64x128xf32>
    %c6 = arith.constant 6 : index
    %c0_40 = arith.constant 0 : index
    %c0_41 = arith.constant 0 : index
    %58 = vector.load %arg2[%c6, %c0_40, %c0_41] : memref<8x128x128xbf16, #tpu.memory_space<vmem>>, vector<1x128x128xbf16>
    %59 = vector.shape_cast %58 : vector<1x128x128xbf16> to vector<128x128xbf16>
    %c6_42 = arith.constant 6 : index
    %c0_43 = arith.constant 0 : index
    %60 = vector.load %arg3[%c6_42, %c0_43] : memref<8x128xf32, #tpu.memory_space<vmem>>, vector<1x128xf32>
    %61 = arith.truncf %57 : vector<64x128xf32> to vector<64x128xbf16>
    %cst_44 = arith.constant dense<0.000000e+00> : vector<64x128xf32>
    %62 = tpu.matmul %61, %59, %cst_44 {dimension_numbers = #tpu.dot_dimension_numbers<[1], [0], [0], [1], [0, 0, 1, 1], [], []>} : vector<64x128xbf16>, vector<128x128xbf16>, vector<64x128xf32> -> vector<64x128xf32>
    %63 = vector.broadcast %60 : vector<1x128xf32> to vector<64x128xf32>
    %64 = arith.addf %62, %63 : vector<64x128xf32>
    %cst_45 = arith.constant 0.000000e+00 : f32
    %65 = vector.broadcast %cst_45 : f32 to vector<64x128xf32>
    %66 = arith.maximumf %64, %65 : vector<64x128xf32>
    %c7 = arith.constant 7 : index
    %c0_46 = arith.constant 0 : index
    %c0_47 = arith.constant 0 : index
    %67 = vector.load %arg2[%c7, %c0_46, %c0_47] : memref<8x128x128xbf16, #tpu.memory_space<vmem>>, vector<1x128x128xbf16>
    %68 = vector.shape_cast %67 : vector<1x128x128xbf16> to vector<128x128xbf16>
    %c7_48 = arith.constant 7 : index
    %c0_49 = arith.constant 0 : index
    %69 = vector.load %arg3[%c7_48, %c0_49] : memref<8x128xf32, #tpu.memory_space<vmem>>, vector<1x128xf32>
    %70 = arith.truncf %66 : vector<64x128xf32> to vector<64x128xbf16>
    %cst_50 = arith.constant dense<0.000000e+00> : vector<64x128xf32>
    %71 = tpu.matmul %70, %68, %cst_50 {dimension_numbers = #tpu.dot_dimension_numbers<[1], [0], [0], [1], [0, 0, 1, 1], [], []>} : vector<64x128xbf16>, vector<128x128xbf16>, vector<64x128xf32> -> vector<64x128xf32>
    %72 = vector.broadcast %69 : vector<1x128xf32> to vector<64x128xf32>
    %73 = arith.addf %71, %72 : vector<64x128xf32>
    %cst_51 = arith.constant 0.000000e+00 : f32
    %74 = vector.broadcast %cst_51 : f32 to vector<64x128xf32>
    %75 = arith.maximumf %73, %74 : vector<64x128xf32>
    %c1_52 = arith.constant 1 : index
    %c0_53 = arith.constant 0 : index
    %c0_54 = arith.constant 0 : index
    %76 = vector.load %arg4[%c1_52, %c0_53, %c0_54] : memref<2x64x128xf32, #tpu.memory_space<vmem>>, vector<1x64x128xf32>
    %77 = vector.shape_cast %76 : vector<1x64x128xf32> to vector<64x128xf32>
    %78 = vector.shape_cast %75 : vector<64x128xf32> to vector<1x64x128xf32>
    tpu.vector_store %arg4[%c1_52, %c0_53, %c0_54], %78 {strides = array<i32>} : memref<2x64x128xf32, #tpu.memory_space<vmem>>, vector<1x64x128xf32>,
    return
  }
  func.func @transform_0(%arg0: i32) -> (i32, i32) {
    %c0_i32 = arith.constant 0 : i32
    %c0_i32_0 = arith.constant 0 : i32
    return %arg0, %c0_i32 : i32, i32
  }
  func.func @transform_1(%arg0: i32) -> (i32, i32, i32) {
    %c0_i32 = arith.constant 0 : i32
    %c0_i32_0 = arith.constant 0 : i32
    %c0_i32_1 = arith.constant 0 : i32
    %c0_i32_2 = arith.constant 0 : i32
    return %c0_i32, %c0_i32_0, %c0_i32_1 : i32, i32, i32
  }
  func.func @transform_2(%arg0: i32) -> (i32, i32) {
    %c0_i32 = arith.constant 0 : i32
    %c0_i32_0 = arith.constant 0 : i32
    %c0_i32_1 = arith.constant 0 : i32
    return %c0_i32, %c0_i32_0 : i32, i32
  }
  func.func @transform_3(%arg0: i32) -> (i32, i32, i32) {
    %c0_i32 = arith.constant 0 : i32
    %c0_i32_0 = arith.constant 0 : i32
    %c0_i32_1 = arith.constant 0 : i32
    return %c0_i32, %arg0, %c0_i32_0 : i32, i32, i32
  }
}

</mosaic_0001>

<llo_original>
// kernel: tpu_custom_call.1
$region0: #{tpu_custom_call.1}
  #allocation0 [shape = 'u32[]', space=smem, size = 0x4, offset = 0x4, fixed_abs, tag = 'smem constant byte address 0x4 - core index']
  #allocation1 [shape = 'u32[72,128]{1,0:T(1,128)}', space=vmem, size = 0x9000, scoped, tag = 'internal scratch']
  #allocation9 [shape = 's32[]', space=sflag, size = 0x4, offset = 0, fixed_abs, tag = 'sflag constant byte address 0x0 - dummy sync flag']
  %s0 = inlined_call_operand.hbm [shape: f32[128,128], index: 0, kind: input, shape index: {}]
  %s1 = inlined_call_operand.hbm [shape: bf16[8,128,128], index: 1, kind: input, shape index: {}]
  %s2 = inlined_call_operand.hbm [shape: f32[8,128], index: 2, kind: input, shape index: {}]
  %s3 = inlined_call_operand.hbm [shape: f32[2,128,128], index: 3, kind: output, shape index: {}]
  %s4 = sld [smem:[#allocation0]]
  $region57: #{tpu_custom_call.1} parent=0
    _
  %s6 = ssub.s32 1, %s4
  %s7 = scalar_select 0, %s6, %s4
  $region1: #{tpu_custom_call.1} parent=0
    #allocation2 [shape = 'u8[65536]{0}', space=vmem, size = 0x10000, scoped, tag = 'input window, operand 0']
    #allocation3 [shape = 's32[2]{0}', space=sflag, size = 0x8, scoped, tag = 'scoped memory for tpu_custom_call.1']
    #allocation4 [shape = 's32[2]{0}', space=sflag, size = 0x8, scoped, tag = 'scoped memory for tpu_custom_call.1']
    #allocation5 [shape = 'u8[262144]{0}', space=vmem, size = 0x40000, scoped, tag = 'input window, operand 1, single buffered']
    #allocation6 [shape = 's32[1]{0}', space=sflag, size = 0x4, scoped, tag = 'scoped memory for tpu_custom_call.1']
    #allocation7 [shape = 'u8[4096]{0}', space=vmem, size = 0x1000, scoped, tag = 'input window, operand 2, single buffered']
    #allocation8 [shape = 'u8[131072]{0}', space=vmem, size = 0x20000, scoped, tag = 'output window, operand 0']
    %8 = vsyncpa [#allocation3], 0
    %s9 = scalar_lea.sflag [#allocation3], 1
    %10 = vsyncpa %s9, 0
    %11 = vsyncpa [#allocation6], 0
    %12 = vsyncpa [#allocation4], 0
    %s13 = scalar_lea.sflag [#allocation4], 1
    %14 = vsyncpa %s13, 0
    loop: start=0, step=1, limit=4
    $region2: #{tpu_custom_call.1} parent=1 // loop_pre_header
      _
    $region3: #{tpu_custom_call.1} parent=1 // loop_header
      %s16 = sphi 0, %s20
      %p17 = scmp.ge.s32.totalorder %s16, 4
      %s26 = sphi 0, %s28
      %s29 = sphi 0, %s26
      %s30 = sphi 0, %s29
      %s46 = sphi 0, %s30
      %s50 = sphi 0, %s50
      %s52 = sphi 0, %s50
      %s53 = sphi 0, %s52
      %s67 = sphi 0, %s53
      %s71 = sphi 0, %s71
      %s73 = sphi 0, %s71
      %s74 = sphi 0, %s73
      %s88 = sphi 0, %s74
      %s94 = sphi 0, %s96
      %s97 = sphi 0, %s94
      %s98 = sphi 0, %s97
      %s114 = sphi 0, %s98
    $region4: #{tpu_custom_call.1} parent=1 // loop_header_branch
      %19 = sbr.rel (%p17) target = $region8
    $region5: #{tpu_custom_call.1} parent=1 // loop_body
      %s21 = ssub.s32 %s16, 1
      %s22 = ssub.s32 %s16, 2
      %s23 = sadd.s32 %s16, 1
      %s24 = ssub.s32 %s16, %s23
      %p25 = scmp.eq.s32.totalorder %s24, 0
      %s27 = sadd.s32 %s26, 1
      %s28 = scalar_select %p25, %s26, %s27
      %p31 = pneg %p25
      %p32 = scmp.eq.s32.totalorder %s16, 1
      %p33 = por %p31, %p32
      %p34 = scmp.ne.s32.totalorder %s26, %s29
      %p35 = scmp.eq.s32.totalorder %s16, 0
      %p36 = por %p34, %p35
      %p37 = scmp.ne.s32.totalorder %s26, %s29
      %p38 = scmp.eq.s32.totalorder %s21, 1
      %p39 = por %p37, %p38
      %p40 = scmp.ne.s32.totalorder %s29, %s30
      %p41 = scmp.eq.s32.totalorder %s21, 0
      %p42 = por %p40, %p41
      %p43 = scmp.ne.s32.totalorder %s29, %s30
      %p44 = scmp.eq.s32.totalorder %s22, 1
      %p45 = por %p43, %p44
      %p47 = scmp.ne.s32.totalorder %s30, %s46
      %p48 = scmp.eq.s32.totalorder %s22, 0
      %p49 = por %p47, %p48
      %s51 = sadd.s32 %s50, 1
      %p54 = scmp.eq.s32.totalorder %s16, 1
      %p55 = scmp.ne.s32.totalorder %s50, %s52
      %p56 = scmp.eq.s32.totalorder %s16, 0
      %p57 = por %p55, %p56
      %p58 = scmp.ne.s32.totalorder %s50, %s52
      %p59 = scmp.eq.s32.totalorder %s21, 1
      %p60 = por %p58, %p59
      %p61 = scmp.ne.s32.totalorder %s52, %s53
      %p62 = scmp.eq.s32.totalorder %s21, 0
      %p63 = por %p61, %p62
      %p64 = scmp.ne.s32.totalorder %s52, %s53
      %p65 = scmp.eq.s32.totalorder %s22, 1
      %p66 = por %p64, %p65
      %p68 = scmp.ne.s32.totalorder %s53, %s67
      %p69 = scmp.eq.s32.totalorder %s22, 0
      %p70 = por %p68, %p69
      %s72 = sadd.s32 %s71, 1
      %p75 = scmp.eq.s32.totalorder %s16, 1
      %p76 = scmp.ne.s32.totalorder %s71, %s73
      %p77 = scmp.eq.s32.totalorder %s16, 0
      %p78 = por %p76, %p77
      %p79 = scmp.ne.s32.totalorder %s71, %s73
      %p80 = scmp.eq.s32.totalorder %s21, 1
      %p81 = por %p79, %p80
      %p82 = scmp.ne.s32.totalorder %s73, %s74
      %p83 = scmp.eq.s32.totalorder %s21, 0
      %p84 = por %p82, %p83
      %p85 = scmp.ne.s32.totalorder %s73, %s74
      %p86 = scmp.eq.s32.totalorder %s22, 1
      %p87 = por %p85, %p86
      %p89 = scmp.ne.s32.totalorder %s74, %s88
      %p90 = scmp.eq.s32.totalorder %s22, 0
      %p91 = por %p89, %p90
      %s92 = ssub.s32 %s16, %s23
      %p93 = scmp.eq.s32.totalorder %s92, 0
      %s95 = sadd.s32 %s94, 1
      %s96 = scalar_select %p93, %s94, %s95
      %p99 = pneg %p93
      %p100 = scmp.eq.s32.totalorder %s16, 1
      %p101 = por %p99, %p100
      %p102 = scmp.ne.s32.totalorder %s94, %s97
      %p103 = scmp.eq.s32.totalorder %s16, 0
      %p104 = por %p102, %p103
      %p105 = scmp.ne.s32.totalorder %s94, %s97
      %p106 = scmp.eq.s32.totalorder %s21, 1
      %p107 = por %p105, %p106
      %p108 = scmp.ne.s32.totalorder %s97, %s98
      %p109 = scmp.eq.s32.totalorder %s21, 0
      %p110 = por %p108, %p109
      %p111 = scmp.ne.s32.totalorder %s97, %s98
      %p112 = scmp.eq.s32.totalorder %s22, 1
      %p113 = por %p111, %p112
      %p115 = scmp.ne.s32.totalorder %s98, %s114
      %p116 = scmp.eq.s32.totalorder %s22, 0
      %p117 = por %p115, %p116
      %p118 = scmp.le.s32.totalorder 1, %s16
      %p119 = scmp.lt.s32.totalorder %s16, 3
      %p120 = pnand %p118, %p119
      %p121 = pneg %p120
      // Predicated region
      $region9: #{tpu_custom_call.1} parent=5 // pred_check
        _
      $region10: #{tpu_custom_call.1} parent=5 // pred_check_branch
        %123 = sbr.rel (%p120) target = $region12
      $region11: #{tpu_custom_call.1} parent=5 // pred_region
        %s124 = ssub.s32 %s16, 1
        // Predicated region
        $region13: #{tpu_custom_call.1} parent=11 // pred_check
          %p125 = pneg %p63
        $region14: #{tpu_custom_call.1} parent=11 // pred_check_branch
          %127 = sbr.rel (%p125) target = $region16
        $region15: #{tpu_custom_call.1} parent=11 // pred_region
          %129 = vsyncadd [#allocation6], 0
          %s130 = sshll.u32 %s1, 4
          %s131 = int_to_ptr.hbm [resolvable:$true] %s130
          %s132 = sshll.u32 [#allocation5], 4
          %s133 = int_to_ptr.vmem [resolvable:$true] %s132
          %138 = dma.hbm_to_vmem [thread:$0]  %s131, 8192, %s133, [#allocation6], 64, 64, 4
        $region16: #{tpu_custom_call.1} parent=11 // pred_fallthru
          _
        // Predicated region
        $region17: #{tpu_custom_call.1} parent=11 // pred_check
          %p139 = pneg %p84
        $region18: #{tpu_custom_call.1} parent=11 // pred_check_branch
          %141 = sbr.rel (%p139) target = $region20
        $region19: #{tpu_custom_call.1} parent=11 // pred_region
          %143 = vsyncadd [#allocation6], 0
          %s145 = sshll.u32 %s2, 4
          %s146 = int_to_ptr.hbm [resolvable:$true] %s145
          %s147 = sshll.u32 [#allocation7], 4
          %s148 = int_to_ptr.vmem [resolvable:$true] %s147
          %150 = dma.hbm_to_vmem [thread:$0]  %s146, 128, %s148, [#allocation6]
        $region20: #{tpu_custom_call.1} parent=11 // pred_fallthru
          _
      $region12: #{tpu_custom_call.1} parent=5 // pred_fallthru
        _
      %p151 = scmp.lt.s32.totalorder %s16, 2
      // Predicated region
      $region21: #{tpu_custom_call.1} parent=5 // pred_check
        %p152 = pneg %p151
      $region22: #{tpu_custom_call.1} parent=5 // pred_check_branch
        %154 = sbr.rel (%p152) target = $region24
      $region23: #{tpu_custom_call.1} parent=5 // pred_region
        // Predicated region
        $region25: #{tpu_custom_call.1} parent=23 // pred_check
          %p155 = pneg %p36
        $region26: #{tpu_custom_call.1} parent=23 // pred_check_branch
          %157 = sbr.rel (%p155) target = $region28
        $region27: #{tpu_custom_call.1} parent=23 // pred_region
          %s158 = sand.u32 %s26, 1
          %s159 = scalar_lea.sflag [#allocation3], %s158
          %s160 = sand.u32 %s26, 1
          %s161 = smul.addr %s160, 64
          %s162 = scalar_lea.vmem [#allocation2], %s161
          %s163 = smul.u32 8, %s16
          %165 = vsyncadd %s159, 0
          %s166 = smul.addr %s163, 8
          %s167 = scalar_lea.hbm %s0, %s166
          %s168 = sshll.u32 %s167, 4
          %s169 = int_to_ptr.hbm [resolvable:$true] %s168
          %s170 = sshll.u32 %s162, 4
          %s171 = int_to_ptr.vmem [resolvable:$true] %s170
          %176 = dma.hbm_to_vmem [thread:$0]  %s169, 1024, %s171, %s159, 128, 128, 8
        $region28: #{tpu_custom_call.1} parent=23 // pred_fallthru
          _
      $region24: #{tpu_custom_call.1} parent=5 // pred_fallthru
        _
      %p177 = scmp.le.s32.totalorder 1, %s16
      %p178 = scmp.lt.s32.totalorder %s16, 3
      %p179 = pnand %p177, %p178
      %p180 = pneg %p179
      // Predicated region
      $region29: #{tpu_custom_call.1} parent=5 // pred_check
        _
      $region30: #{tpu_custom_call.1} parent=5 // pred_check_branch
        %182 = sbr.rel (%p179) target = $region32
      $region31: #{tpu_custom_call.1} parent=5 // pred_region
        %s183 = ssub.s32 %s16, 1
        %s184 = sand.u32 %s29, 1
        %s185 = scalar_lea.sflag [#allocation3], %s184
        %s186 = sand.u32 %s29, 1
        %s187 = smul.addr %s186, 64
        %s188 = scalar_lea.vmem [#allocation2], %s187
        // Predicated region
        $region33: #{tpu_custom_call.1} parent=31 // pred_check
          %p189 = pneg %p42
        $region34: #{tpu_custom_call.1} parent=31 // pred_check_branch
          %191 = sbr.rel (%p189) target = $region36
        $region35: #{tpu_custom_call.1} parent=31 // pred_region
          %193 = dma.done %s185, 1024
        $region36: #{tpu_custom_call.1} parent=31 // pred_fallthru
          _
        // Predicated region
        $region37: #{tpu_custom_call.1} parent=31 // pred_check
          %p194 = pneg %p63
        $region38: #{tpu_custom_call.1} parent=31 // pred_check_branch
          %196 = sbr.rel (%p194) target = $region40
        $region39: #{tpu_custom_call.1} parent=31 // pred_region
          %198 = dma.done [#allocation6], 8192
        $region40: #{tpu_custom_call.1} parent=31 // pred_fallthru
          _
        // Predicated region
        $region41: #{tpu_custom_call.1} parent=31 // pred_check
          %p199 = pneg %p84
        $region42: #{tpu_custom_call.1} parent=31 // pred_check_branch
          %201 = sbr.rel (%p199) target = $region44
        $region43: #{tpu_custom_call.1} parent=31 // pred_region
          %203 = dma.done [#allocation6], 128
        $region44: #{tpu_custom_call.1} parent=31 // pred_fallthru
          _
        %s204 = sand.u32 %s29, 1
        %s205 = scalar_lea.sflag [#allocation3], %s204
        %s206 = sand.u32 %s29, 1
        %s207 = smul.addr %s206, 64
        %s208 = scalar_lea.vmem [#allocation2], %s207
        %p209 = pneg %p42
        %p210 = pneg %p39
        %p211 = pneg %p63
        %p212 = pneg %p60
        %p213 = pneg %p84
        %p214 = pneg %p81
        %p215 = pneg %p110
        %p216 = pneg %p107
        %s217 = sand.u32 %s97, 1
        %s218 = scalar_lea.sflag [#allocation4], %s217
        %s219 = sand.u32 %s97, 1
        %s220 = smul.addr %s219, 128
        %s221 = scalar_lea.vmem [#allocation8], %s220
        %s222 = smul.u32 8, %s21
        %s223 = smul.u32 8, %s21
        %v224 = vld [vmem:[%s188] sm:$0xff]
        %v225 = vld [vmem:[%s188 + $0x8] sm:$0xff]
        %v226 = vld [vmem:[%s188 + $0x10] sm:$0xff]
        %v227 = vld [vmem:[%s188 + $0x18] sm:$0xff]
        %v228 = vld [vmem:[%s188 + $0x20] sm:$0xff]
        %v229 = vld [vmem:[%s188 + $0x28] sm:$0xff]
        %v230 = vld [vmem:[%s188 + $0x30] sm:$0xff]
        %v231 = vld [vmem:[%s188 + $0x38] sm:$0xff]
        %v232 = vld [vmem:[#allocation5] sm:$0xf]
        %v233 = vld [vmem:[#allocation5 + $0x4] sm:$0xf]
        %v234 = vld [vmem:[#allocation5 + $0x8] sm:$0xf]
        %v235 = vld [vmem:[#allocation5 + $0xc] sm:$0xf]
        %v236 = vld [vmem:[#allocation5 + $0x10] sm:$0xf]
        %v237 = vld [vmem:[#allocation5 + $0x14] sm:$0xf]
        %v238 = vld [vmem:[#allocation5 + $0x18] sm:$0xf]
        %v239 = vld [vmem:[#allocation5 + $0x1c] sm:$0xf]
        %v240 = vld [vmem:[#allocation5 + $0x20] sm:$0xf]
        %v241 = vld [vmem:[#allocation5 + $0x24] sm:$0xf]
        %v242 = vld [vmem:[#allocation5 + $0x28] sm:$0xf]
        %v243 = vld [vmem:[#allocation5 + $0x2c] sm:$0xf]
        %v244 = vld [vmem:[#allocation5 + $0x30] sm:$0xf]
        %v245 = vld [vmem:[#allocation5 + $0x34] sm:$0xf]
        %v246 = vld [vmem:[#allocation5 + $0x38] sm:$0xf]
        %v247 = vld [vmem:[#allocation5 + $0x3c] sm:$0xf]
        %v248 = vld [vmem:[#allocation7] sm:$0x1]
        %v249 = vpack.c.bf16 %v225, %v224
        %v250 = vpack.c.bf16 %v227, %v226
        %v251 = vpack.c.bf16 %v229, %v228
        %v252 = vpack.c.bf16 %v231, %v230
        %v253 = vperm.slane %v248, 0
        %v270 = vunpack.c.l.b16 %v232
        %v271 = vunpack.c.l.b16 %v233
        %v272 = vunpack.c.l.b16 %v234
        %v273 = vunpack.c.l.b16 %v235
        %v274 = vunpack.c.l.b16 %v236
        %v275 = vunpack.c.l.b16 %v237
        %v276 = vunpack.c.l.b16 %v238
        %v277 = vunpack.c.l.b16 %v239
        %v278 = vunpack.c.l.b16 %v240
        %v279 = vunpack.c.l.b16 %v241
        %v280 = vunpack.c.l.b16 %v242
        %v281 = vunpack.c.l.b16 %v243
        %v282 = vunpack.c.l.b16 %v244
        %v283 = vunpack.c.l.b16 %v245
        %v284 = vunpack.c.l.b16 %v246
        %v285 = vunpack.c.l.b16 %v247
        %v286 = vpack.c.b16 %v271, %v270
        %v287 = vpack.c.b16 %v273, %v272
        %v288 = vpack.c.b16 %v275, %v274
        %v289 = vpack.c.b16 %v277, %v276
        %v290 = vpack.c.b16 %v279, %v278
        %v291 = vpack.c.b16 %v281, %v280
        %v292 = vpack.c.b16 %v283, %v282
        %v293 = vpack.c.b16 %v285, %v284
        %302 = vmatpush.bf16.msra.mxu0 %v293
        %303 = vmatpush.bf16.msra.mxu0 %v292
        %304 = vmatpush.bf16.msra.mxu0 %v291
        %305 = vmatpush.bf16.msra.mxu0 %v290
        %306 = vmatpush.bf16.msra.mxu0 %v289
        %307 = vmatpush.bf16.msra.mxu0 %v288
        %308 = vmatpush.bf16.msra.mxu0 %v287
        %309 = vmatpush.bf16.msra.mxu0 %v286
        %310 = vmatmul.bf16.gmra.mxu0 %v249
        %v311 = vpop.f32.mrf.mxu0
        %v312 = vadd.f32 %v253, %v311
        %v313 = vpop.f32.mrf.mxu0
        %v314 = vadd.f32 %v253, %v313
        %315 = vmatmul.bf16.gmra.mxu0 %v250
        %v316 = vpop.f32.mrf.mxu0
        %v317 = vadd.f32 %v253, %v316
        %v318 = vpop.f32.mrf.mxu0
        %v319 = vadd.f32 %v253, %v318
        %320 = vmatmul.bf16.gmra.mxu0 %v251
        %v321 = vpop.f32.mrf.mxu0
        %v322 = vadd.f32 %v253, %v321
        %v323 = vpop.f32.mrf.mxu0
        %v324 = vadd.f32 %v253, %v323
        %325 = vmatmul.bf16.gmra.mxu0 %v252
        %v326 = vpop.f32.mrf.mxu0
        %v327 = vadd.f32 %v253, %v326
        %v328 = vpop.f32.mrf.mxu0
        %v329 = vadd.f32 %v253, %v328
        %330 = vdwg.mxu0
        %v331 = vmax.f32 %v312, 0.0
        %v332 = vmax.f32 %v314, 0.0
        %v333 = vmax.f32 %v317, 0.0
        %v334 = vmax.f32 %v319, 0.0
        %v335 = vmax.f32 %v322, 0.0
        %v336 = vmax.f32 %v324, 0.0
        %v337 = vmax.f32 %v327, 0.0
        %v338 = vmax.f32 %v329, 0.0
        %s339 = scalar_lea.vmem [#allocation5], 64
        %v340 = vld [vmem:[%s339] sm:$0xf]
        %v341 = vld [vmem:[%s339 + $0x4] sm:$0xf]
        %v342 = vld [vmem:[%s339 + $0x8] sm:$0xf]
        %v343 = vld [vmem:[%s339 + $0xc] sm:$0xf]
        %v344 = vld [vmem:[%s339 + $0x10] sm:$0xf]
        %v345 = vld [vmem:[%s339 + $0x14] sm:$0xf]
        %v346 = vld [vmem:[%s339 + $0x18] sm:$0xf]
        %v347 = vld [vmem:[%s339 + $0x1c] sm:$0xf]
        %v348 = vld [vmem:[%s339 + $0x20] sm:$0xf]
        %v349 = vld [vmem:[%s339 + $0x24] sm:$0xf]
        %v350 = vld [vmem:[%s339 + $0x28] sm:$0xf]
        %v351 = vld [vmem:[%s339 + $0x2c] sm:$0xf]
        %v352 = vld [vmem:[%s339 + $0x30] sm:$0xf]
        %v353 = vld [vmem:[%s339 + $0x34] sm:$0xf]
        %v354 = vld [vmem:[%s339 + $0x38] sm:$0xf]
        %v355 = vld [vmem:[%s339 + $0x3c] sm:$0xf]
        %v356 = vld [vmem:[#allocation7 + $0x1] sm:$0x1]
        %v357 = vpack.c.bf16 %v332, %v331
        %v358 = vpack.c.bf16 %v334, %v333
        %v359 = vpack.c.bf16 %v336, %v335
        %v360 = vpack.c.bf16 %v338, %v337
        %v361 = vperm.slane %v356, 0
        %v378 = vunpack.c.l.b16 %v340
        %v379 = vunpack.c.l.b16 %v341
        %v380 = vunpack.c.l.b16 %v342
        %v381 = vunpack.c.l.b16 %v343
        %v382 = vunpack.c.l.b16 %v344
        %v383 = vunpack.c.l.b16 %v345
        %v384 = vunpack.c.l.b16 %v346
        %v385 = vunpack.c.l.b16 %v347
        %v386 = vunpack.c.l.b16 %v348
        %v387 = vunpack.c.l.b16 %v349
        %v388 = vunpack.c.l.b16 %v350
        %v389 = vunpack.c.l.b16 %v351
        %v390 = vunpack.c.l.b16 %v352
        %v391 = vunpack.c.l.b16 %v353
        %v392 = vunpack.c.l.b16 %v354
        %v393 = vunpack.c.l.b16 %v355
        %v394 = vpack.c.b16 %v379, %v378
        %v395 = vpack.c.b16 %v381, %v380
        %v396 = vpack.c.b16 %v383, %v382
        %v397 = vpack.c.b16 %v385, %v384
        %v398 = vpack.c.b16 %v387, %v386
        %v399 = vpack.c.b16 %v389, %v388
        %v400 = vpack.c.b16 %v391, %v390
        %v401 = vpack.c.b16 %v393, %v392
        %410 = vmatpush.bf16.msra.mxu0 %v401
        %411 = vmatpush.bf16.msra.mxu0 %v400
        %412 = vmatpush.bf16.msra.mxu0 %v399
        %413 = vmatpush.bf16.msra.mxu0 %v398
        %414 = vmatpush.bf16.msra.mxu0 %v397
        %415 = vmatpush.bf16.msra.mxu0 %v396
        %416 = vmatpush.bf16.msra.mxu0 %v395
        %417 = vmatpush.bf16.msra.mxu0 %v394
        %418 = vmatmul.bf16.gmra.mxu0 %v357
        %v419 = vpop.f32.mrf.mxu0
        %v420 = vadd.f32 %v361, %v419
        %v421 = vpop.f32.mrf.mxu0
        %v422 = vadd.f32 %v361, %v421
        %423 = vmatmul.bf16.gmra.mxu0 %v358
        %v424 = vpop.f32.mrf.mxu0
        %v425 = vadd.f32 %v361, %v424
        %v426 = vpop.f32.mrf.mxu0
        %v427 = vadd.f32 %v361, %v426
        %428 = vmatmul.bf16.gmra.mxu0 %v359
        %v429 = vpop.f32.mrf.mxu0
        %v430 = vadd.f32 %v361, %v429
        %v431 = vpop.f32.mrf.mxu0
        %v432 = vadd.f32 %v361, %v431
        %433 = vmatmul.bf16.gmra.mxu0 %v360
        %v434 = vpop.f32.mrf.mxu0
        %v435 = vadd.f32 %v361, %v434
        %v436 = vpop.f32.mrf.mxu0
        %v437 = vadd.f32 %v361, %v436
        %438 = vdwg.mxu0
        %v439 = vmax.f32 %v420, 0.0
        %v440 = vmax.f32 %v422, 0.0
        %v441 = vmax.f32 %v425, 0.0
        %v442 = vmax.f32 %v427, 0.0
        %v443 = vmax.f32 %v430, 0.0
        %v444 = vmax.f32 %v432, 0.0
        %v445 = vmax.f32 %v435, 0.0
        %v446 = vmax.f32 %v437, 0.0
        %s447 = scalar_lea.vmem [#allocation5], 128
        %v448 = vld [vmem:[%s447] sm:$0xf]
        %v449 = vld [vmem:[%s447 + $0x4] sm:$0xf]
        %v450 = vld [vmem:[%s447 + $0x8] sm:$0xf]
        %v451 = vld [vmem:[%s447 + $0xc] sm:$0xf]
        %v452 = vld [vmem:[%s447 + $0x10] sm:$0xf]
        %v453 = vld [vmem:[%s447 + $0x14] sm:$0xf]
        %v454 = vld [vmem:[%s447 + $0x18] sm:$0xf]
        %v455 = vld [vmem:[%s447 + $0x1c] sm:$0xf]
        %v456 = vld [vmem:[%s447 + $0x20] sm:$0xf]
        %v457 = vld [vmem:[%s447 + $0x24] sm:$0xf]
        %v458 = vld [vmem:[%s447 + $0x28] sm:$0xf]
        %v459 = vld [vmem:[%s447 + $0x2c] sm:$0xf]
        %v460 = vld [vmem:[%s447 + $0x30] sm:$0xf]
        %v461 = vld [vmem:[%s447 + $0x34] sm:$0xf]
        %v462 = vld [vmem:[%s447 + $0x38] sm:$0xf]
        %v463 = vld [vmem:[%s447 + $0x3c] sm:$0xf]
        %v464 = vld [vmem:[#allocation7 + $0x2] sm:$0x1]
        %v465 = vpack.c.bf16 %v440, %v439
        %v466 = vpack.c.bf16 %v442, %v441
        %v467 = vpack.c.bf16 %v444, %v443
        %v468 = vpack.c.bf16 %v446, %v445
        %v469 = vperm.slane %v464, 0
        %v486 = vunpack.c.l.b16 %v448
        %v487 = vunpack.c.l.b16 %v449
        %v488 = vunpack.c.l.b16 %v450
        %v489 = vunpack.c.l.b16 %v451
        %v490 = vunpack.c.l.b16 %v452
        %v491 = vunpack.c.l.b16 %v453
        %v492 = vunpack.c.l.b16 %v454
        %v493 = vunpack.c.l.b16 %v455
        %v494 = vunpack.c.l.b16 %v456
        %v495 = vunpack.c.l.b16 %v457
        %v496 = vunpack.c.l.b16 %v458
        %v497 = vunpack.c.l.b16 %v459
        %v498 = vunpack.c.l.b16 %v460
        %v499 = vunpack.c.l.b16 %v461
        %v500 = vunpack.c.l.b16 %v462
        %v501 = vunpack.c.l.b16 %v463
        %v502 = vpack.c.b16 %v487, %v486
        %v503 = vpack.c.b16 %v489, %v488
        %v504 = vpack.c.b16 %v491, %v490
        %v505 = vpack.c.b16 %v493, %v492
        %v506 = vpack.c.b16 %v495, %v494
        %v507 = vpack.c.b16 %v497, %v496
        %v508 = vpack.c.b16 %v499, %v498
        %v509 = vpack.c.b16 %v501, %v500
        %518 = vmatpush.bf16.msra.mxu0 %v509
        %519 = vmatpush.bf16.msra.mxu0 %v508
        %520 = vmatpush.bf16.msra.mxu0 %v507
        %521 = vmatpush.bf16.msra.mxu0 %v506
        %522 = vmatpush.bf16.msra.mxu0 %v505
        %523 = vmatpush.bf16.msra.mxu0 %v504
        %524 = vmatpush.bf16.msra.mxu0 %v503
        %525 = vmatpush.bf16.msra.mxu0 %v502
        %526 = vmatmul.bf16.gmra.mxu0 %v465
        %v527 = vpop.f32.mrf.mxu0
        %v528 = vadd.f32 %v469, %v527
        %v529 = vpop.f32.mrf.mxu0
        %v530 = vadd.f32 %v469, %v529
        %531 = vmatmul.bf16.gmra.mxu0 %v466
        %v532 = vpop.f32.mrf.mxu0
        %v533 = vadd.f32 %v469, %v532
        %v534 = vpop.f32.mrf.mxu0
        %v535 = vadd.f32 %v469, %v534
        %536 = vmatmul.bf16.gmra.mxu0 %v467
        %v537 = vpop.f32.mrf.mxu0
        %v538 = vadd.f32 %v469, %v537
        %v539 = vpop.f32.mrf.mxu0
        %v540 = vadd.f32 %v469, %v539
        %541 = vmatmul.bf16.gmra.mxu0 %v468
        %v542 = vpop.f32.mrf.mxu0
        %v543 = vadd.f32 %v469, %v542
        %v544 = vpop.f32.mrf.mxu0
        %v545 = vadd.f32 %v469, %v544
        %546 = vdwg.mxu0
        %v547 = vmax.f32 %v528, 0.0
        %v548 = vmax.f32 %v530, 0.0
        %v549 = vmax.f32 %v533, 0.0
        %v550 = vmax.f32 %v535, 0.0
        %v551 = vmax.f32 %v538, 0.0
        %v552 = vmax.f32 %v540, 0.0
        %v553 = vmax.f32 %v543, 0.0
        %v554 = vmax.f32 %v545, 0.0
        %s555 = scalar_lea.vmem [#allocation5], 192
        %v556 = vld [vmem:[%s555] sm:$0xf]
        %v557 = vld [vmem:[%s555 + $0x4] sm:$0xf]
        %v558 = vld [vmem:[%s555 + $0x8] sm:$0xf]
        %v559 = vld [vmem:[%s555 + $0xc] sm:$0xf]
        %v560 = vld [vmem:[%s555 + $0x10] sm:$0xf]
        %v561 = vld [vmem:[%s555 + $0x14] sm:$0xf]
        %v562 = vld [vmem:[%s555 + $0x18] sm:$0xf]
        %v563 = vld [vmem:[%s555 + $0x1c] sm:$0xf]
        %v564 = vld [vmem:[%s555 + $0x20] sm:$0xf]
        %v565 = vld [vmem:[%s555 + $0x24] sm:$0xf]
        %v566 = vld [vmem:[%s555 + $0x28] sm:$0xf]
        %v567 = vld [vmem:[%s555 + $0x2c] sm:$0xf]
        %v568 = vld [vmem:[%s555 + $0x30] sm:$0xf]
        %v569 = vld [vmem:[%s555 + $0x34] sm:$0xf]
        %v570 = vld [vmem:[%s555 + $0x38] sm:$0xf]
        %v571 = vld [vmem:[%s555 + $0x3c] sm:$0xf]
        %v572 = vld [vmem:[#allocation7 + $0x3] sm:$0x1]
        %v573 = vpack.c.bf16 %v548, %v547
        %v574 = vpack.c.bf16 %v550, %v549
        %v575 = vpack.c.bf16 %v552, %v551
        %v576 = vpack.c.bf16 %v554, %v553
        %v577 = vperm.slane %v572, 0
        %v594 = vunpack.c.l.b16 %v556
        %v595 = vunpack.c.l.b16 %v557
        %v596 = vunpack.c.l.b16 %v558
        %v597 = vunpack.c.l.b16 %v559
        %v598 = vunpack.c.l.b16 %v560
        %v599 = vunpack.c.l.b16 %v561
        %v600 = vunpack.c.l.b16 %v562
        %v601 = vunpack.c.l.b16 %v563
        %v602 = vunpack.c.l.b16 %v564
        %v603 = vunpack.c.l.b16 %v565
        %v604 = vunpack.c.l.b16 %v566
        %v605 = vunpack.c.l.b16 %v567
        %v606 = vunpack.c.l.b16 %v568
        %v607 = vunpack.c.l.b16 %v569
        %v608 = vunpack.c.l.b16 %v570
        %v609 = vunpack.c.l.b16 %v571
        %v610 = vpack.c.b16 %v595, %v594
        %v611 = vpack.c.b16 %v597, %v596
        %v612 = vpack.c.b16 %v599, %v598
        %v613 = vpack.c.b16 %v601, %v600
        %v614 = vpack.c.b16 %v603, %v602
        %v615 = vpack.c.b16 %v605, %v604
        %v616 = vpack.c.b16 %v607, %v606
        %v617 = vpack.c.b16 %v609, %v608
        %626 = vmatpush.bf16.msra.mxu0 %v617
        %627 = vmatpush.bf16.msra.mxu0 %v616
        %628 = vmatpush.bf16.msra.mxu0 %v615
        %629 = vmatpush.bf16.msra.mxu0 %v614
        %630 = vmatpush.bf16.msra.mxu0 %v613
        %631 = vmatpush.bf16.msra.mxu0 %v612
        %632 = vmatpush.bf16.msra.mxu0 %v611
        %633 = vmatpush.bf16.msra.mxu0 %v610
        %634 = vmatmul.bf16.gmra.mxu0 %v573
        %v635 = vpop.f32.mrf.mxu0
        %v636 = vadd.f32 %v577, %v635
        %v637 = vpop.f32.mrf.mxu0
        %v638 = vadd.f32 %v577, %v637
        %639 = vmatmul.bf16.gmra.mxu0 %v574
        %v640 = vpop.f32.mrf.mxu0
        %v641 = vadd.f32 %v577, %v640
        %v642 = vpop.f32.mrf.mxu0
        %v643 = vadd.f32 %v577, %v642
        %644 = vmatmul.bf16.gmra.mxu0 %v575
        %v645 = vpop.f32.mrf.mxu0
        %v646 = vadd.f32 %v577, %v645
        %v647 = vpop.f32.mrf.mxu0
        %v648 = vadd.f32 %v577, %v647
        %649 = vmatmul.bf16.gmra.mxu0 %v576
        %v650 = vpop.f32.mrf.mxu0
        %v651 = vadd.f32 %v577, %v650
        %v652 = vpop.f32.mrf.mxu0
        %v653 = vadd.f32 %v577, %v652
        %654 = vdwg.mxu0
        %v655 = vmax.f32 %v636, 0.0
        %v656 = vmax.f32 %v638, 0.0
        %v657 = vmax.f32 %v641, 0.0
        %v658 = vmax.f32 %v643, 0.0
        %v659 = vmax.f32 %v646, 0.0
        %v660 = vmax.f32 %v648, 0.0
        %v661 = vmax.f32 %v651, 0.0
        %v662 = vmax.f32 %v653, 0.0
        %663 = vst [vmem:[%s221] sm:$0xff] %v655
        %664 = vst [vmem:[%s221 + $0x8] sm:$0xff] %v656
        %665 = vst [vmem:[%s221 + $0x10] sm:$0xff] %v657
        %666 = vst [vmem:[%s221 + $0x18] sm:$0xff] %v658
        %667 = vst [vmem:[%s221 + $0x20] sm:$0xff] %v659
        %668 = vst [vmem:[%s221 + $0x28] sm:$0xff] %v660
        %669 = vst [vmem:[%s221 + $0x30] sm:$0xff] %v661
        %670 = vst [vmem:[%s221 + $0x38] sm:$0xff] %v662
        %s671 = scalar_lea.vmem [#allocation5], 256
        %v672 = vld [vmem:[%s671] sm:$0xf]
        %v673 = vld [vmem:[%s671 + $0x4] sm:$0xf]
        %v674 = vld [vmem:[%s671 + $0x8] sm:$0xf]
        %v675 = vld [vmem:[%s671 + $0xc] sm:$0xf]
        %v676 = vld [vmem:[%s671 + $0x10] sm:$0xf]
        %v677 = vld [vmem:[%s671 + $0x14] sm:$0xf]
        %v678 = vld [vmem:[%s671 + $0x18] sm:$0xf]
        %v679 = vld [vmem:[%s671 + $0x1c] sm:$0xf]
        %v680 = vld [vmem:[%s671 + $0x20] sm:$0xf]
        %v681 = vld [vmem:[%s671 + $0x24] sm:$0xf]
        %v682 = vld [vmem:[%s671 + $0x28] sm:$0xf]
        %v683 = vld [vmem:[%s671 + $0x2c] sm:$0xf]
        %v684 = vld [vmem:[%s671 + $0x30] sm:$0xf]
        %v685 = vld [vmem:[%s671 + $0x34] sm:$0xf]
        %v686 = vld [vmem:[%s671 + $0x38] sm:$0xf]
        %v687 = vld [vmem:[%s671 + $0x3c] sm:$0xf]
        %v688 = vld [vmem:[#allocation7 + $0x4] sm:$0x1]
        %v689 = vpack.c.bf16 %v656, %v655
        %v690 = vpack.c.bf16 %v658, %v657
        %v691 = vpack.c.bf16 %v660, %v659
        %v692 = vpack.c.bf16 %v662, %v661
        %v693 = vperm.slane %v688, 0
        %v710 = vunpack.c.l.b16 %v672
        %v711 = vunpack.c.l.b16 %v673
        %v712 = vunpack.c.l.b16 %v674
        %v713 = vunpack.c.l.b16 %v675
        %v714 = vunpack.c.l.b16 %v676
        %v715 = vunpack.c.l.b16 %v677
        %v716 = vunpack.c.l.b16 %v678
        %v717 = vunpack.c.l.b16 %v679
        %v718 = vunpack.c.l.b16 %v680
        %v719 = vunpack.c.l.b16 %v681
        %v720 = vunpack.c.l.b16 %v682
        %v721 = vunpack.c.l.b16 %v683
        %v722 = vunpack.c.l.b16 %v684
        %v723 = vunpack.c.l.b16 %v685
        %v724 = vunpack.c.l.b16 %v686
        %v725 = vunpack.c.l.b16 %v687
        %v726 = vpack.c.b16 %v711, %v710
        %v727 = vpack.c.b16 %v713, %v712
        %v728 = vpack.c.b16 %v715, %v714
        %v729 = vpack.c.b16 %v717, %v716
        %v730 = vpack.c.b16 %v719, %v718
        %v731 = vpack.c.b16 %v721, %v720
        %v732 = vpack.c.b16 %v723, %v722
        %v733 = vpack.c.b16 %v725, %v724
        %742 = vmatpush.bf16.msra.mxu0 %v733
        %743 = vmatpush.bf16.msra.mxu0 %v732
        %744 = vmatpush.bf16.msra.mxu0 %v731
        %745 = vmatpush.bf16.msra.mxu0 %v730
        %746 = vmatpush.bf16.msra.mxu0 %v729
        %747 = vmatpush.bf16.msra.mxu0 %v728
        %748 = vmatpush.bf16.msra.mxu0 %v727
        %749 = vmatpush.bf16.msra.mxu0 %v726
        %750 = vmatmul.bf16.gmra.mxu0 %v689
        %v751 = vpop.f32.mrf.mxu0
        %v752 = vadd.f32 %v693, %v751
        %v753 = vpop.f32.mrf.mxu0
        %v754 = vadd.f32 %v693, %v753
        %755 = vmatmul.bf16.gmra.mxu0 %v690
        %v756 = vpop.f32.mrf.mxu0
        %v757 = vadd.f32 %v693, %v756
        %v758 = vpop.f32.mrf.mxu0
        %v759 = vadd.f32 %v693, %v758
        %760 = vmatmul.bf16.gmra.mxu0 %v691
        %v761 = vpop.f32.mrf.mxu0
        %v762 = vadd.f32 %v693, %v761
        %v763 = vpop.f32.mrf.mxu0
        %v764 = vadd.f32 %v693, %v763
        %765 = vmatmul.bf16.gmra.mxu0 %v692
        %v766 = vpop.f32.mrf.mxu0
        %v767 = vadd.f32 %v693, %v766
        %v768 = vpop.f32.mrf.mxu0
        %v769 = vadd.f32 %v693, %v768
        %770 = vdwg.mxu0
        %v771 = vmax.f32 %v752, 0.0
        %v772 = vmax.f32 %v754, 0.0
        %v773 = vmax.f32 %v757, 0.0
        %v774 = vmax.f32 %v759, 0.0
        %v775 = vmax.f32 %v762, 0.0
        %v776 = vmax.f32 %v764, 0.0
        %v777 = vmax.f32 %v767, 0.0
        %v778 = vmax.f32 %v769, 0.0
        %s779 = scalar_lea.vmem [#allocation5], 320
        %v780 = vld [vmem:[%s779] sm:$0xf]
        %v781 = vld [vmem:[%s779 + $0x4] sm:$0xf]
        %v782 = vld [vmem:[%s779 + $0x8] sm:$0xf]
        %v783 = vld [vmem:[%s779 + $0xc] sm:$0xf]
        %v784 = vld [vmem:[%s779 + $0x10] sm:$0xf]
        %v785 = vld [vmem:[%s779 + $0x14] sm:$0xf]
        %v786 = vld [vmem:[%s779 + $0x18] sm:$0xf]
        %v787 = vld [vmem:[%s779 + $0x1c] sm:$0xf]
        %v788 = vld [vmem:[%s779 + $0x20] sm:$0xf]
        %v789 = vld [vmem:[%s779 + $0x24] sm:$0xf]
        %v790 = vld [vmem:[%s779 + $0x28] sm:$0xf]
        %v791 = vld [vmem:[%s779 + $0x2c] sm:$0xf]
        %v792 = vld [vmem:[%s779 + $0x30] sm:$0xf]
        %v793 = vld [vmem:[%s779 + $0x34] sm:$0xf]
        %v794 = vld [vmem:[%s779 + $0x38] sm:$0xf]
        %v795 = vld [vmem:[%s779 + $0x3c] sm:$0xf]
        %v796 = vld [vmem:[#allocation7 + $0x5] sm:$0x1]
        %v797 = vpack.c.bf16 %v772, %v771
        %v798 = vpack.c.bf16 %v774, %v773
        %v799 = vpack.c.bf16 %v776, %v775
        %v800 = vpack.c.bf16 %v778, %v777
        %v801 = vperm.slane %v796, 0
        %v818 = vunpack.c.l.b16 %v780
        %v819 = vunpack.c.l.b16 %v781
        %v820 = vunpack.c.l.b16 %v782
        %v821 = vunpack.c.l.b16 %v783
        %v822 = vunpack.c.l.b16 %v784
        %v823 = vunpack.c.l.b16 %v785
        %v824 = vunpack.c.l.b16 %v786
        %v825 = vunpack.c.l.b16 %v787
        %v826 = vunpack.c.l.b16 %v788
        %v827 = vunpack.c.l.b16 %v789
        %v828 = vunpack.c.l.b16 %v790
        %v829 = vunpack.c.l.b16 %v791
        %v830 = vunpack.c.l.b16 %v792
        %v831 = vunpack.c.l.b16 %v793
        %v832 = vunpack.c.l.b16 %v794
        %v833 = vunpack.c.l.b16 %v795
        %v834 = vpack.c.b16 %v819, %v818
        %v835 = vpack.c.b16 %v821, %v820
        %v836 = vpack.c.b16 %v823, %v822
        %v837 = vpack.c.b16 %v825, %v824
        %v838 = vpack.c.b16 %v827, %v826
        %v839 = vpack.c.b16 %v829, %v828
        %v840 = vpack.c.b16 %v831, %v830
        %v841 = vpack.c.b16 %v833, %v832
        %850 = vmatpush.bf16.msra.mxu0 %v841
        %851 = vmatpush.bf16.msra.mxu0 %v840
        %852 = vmatpush.bf16.msra.mxu0 %v839
        %853 = vmatpush.bf16.msra.mxu0 %v838
        %854 = vmatpush.bf16.msra.mxu0 %v837
        %855 = vmatpush.bf16.msra.mxu0 %v836
        %856 = vmatpush.bf16.msra.mxu0 %v835
        %857 = vmatpush.bf16.msra.mxu0 %v834
        %858 = vmatmul.bf16.gmra.mxu0 %v797
        %v859 = vpop.f32.mrf.mxu0
        %v860 = vadd.f32 %v801, %v859
        %v861 = vpop.f32.mrf.mxu0
        %v862 = vadd.f32 %v801, %v861
        %863 = vmatmul.bf16.gmra.mxu0 %v798
        %v864 = vpop.f32.mrf.mxu0
        %v865 = vadd.f32 %v801, %v864
        %v866 = vpop.f32.mrf.mxu0
        %v867 = vadd.f32 %v801, %v866
        %868 = vmatmul.bf16.gmra.mxu0 %v799
        %v869 = vpop.f32.mrf.mxu0
        %v870 = vadd.f32 %v801, %v869
        %v871 = vpop.f32.mrf.mxu0
        %v872 = vadd.f32 %v801, %v871
        %873 = vmatmul.bf16.gmra.mxu0 %v800
        %v874 = vpop.f32.mrf.mxu0
        %v875 = vadd.f32 %v801, %v874
        %v876 = vpop.f32.mrf.mxu0
        %v877 = vadd.f32 %v801, %v876
        %878 = vdwg.mxu0
        %v879 = vmax.f32 %v860, 0.0
        %v880 = vmax.f32 %v862, 0.0
        %v881 = vmax.f32 %v865, 0.0
        %v882 = vmax.f32 %v867, 0.0
        %v883 = vmax.f32 %v870, 0.0
        %v884 = vmax.f32 %v872, 0.0
        %v885 = vmax.f32 %v875, 0.0
        %v886 = vmax.f32 %v877, 0.0
        %s887 = scalar_lea.vmem [#allocation5], 384
        %v888 = vld [vmem:[%s887] sm:$0xf]
        %v889 = vld [vmem:[%s887 + $0x4] sm:$0xf]
        %v890 = vld [vmem:[%s887 + $0x8] sm:$0xf]
        %v891 = vld [vmem:[%s887 + $0xc] sm:$0xf]
        %v892 = vld [vmem:[%s887 + $0x10] sm:$0xf]
        %v893 = vld [vmem:[%s887 + $0x14] sm:$0xf]
        %v894 = vld [vmem:[%s887 + $0x18] sm:$0xf]
        %v895 = vld [vmem:[%s887 + $0x1c] sm:$0xf]
        %v896 = vld [vmem:[%s887 + $0x20] sm:$0xf]
        %v897 = vld [vmem:[%s887 + $0x24] sm:$0xf]
        %v898 = vld [vmem:[%s887 + $0x28] sm:$0xf]
        %v899 = vld [vmem:[%s887 + $0x2c] sm:$0xf]
        %v900 = vld [vmem:[%s887 + $0x30] sm:$0xf]
        %v901 = vld [vmem:[%s887 + $0x34] sm:$0xf]
        %v902 = vld [vmem:[%s887 + $0x38] sm:$0xf]
        %v903 = vld [vmem:[%s887 + $0x3c] sm:$0xf]
        %v904 = vld [vmem:[#allocation7 + $0x6] sm:$0x1]
        %v905 = vpack.c.bf16 %v880, %v879
        %v906 = vpack.c.bf16 %v882, %v881
        %v907 = vpack.c.bf16 %v884, %v883
        %v908 = vpack.c.bf16 %v886, %v885
        %v909 = vperm.slane %v904, 0
        %v926 = vunpack.c.l.b16 %v888
        %v927 = vunpack.c.l.b16 %v889
        %v928 = vunpack.c.l.b16 %v890
        %v929 = vunpack.c.l.b16 %v891
        %v930 = vunpack.c.l.b16 %v892
        %v931 = vunpack.c.l.b16 %v893
        %v932 = vunpack.c.l.b16 %v894
        %v933 = vunpack.c.l.b16 %v895
        %v934 = vunpack.c.l.b16 %v896
        %v935 = vunpack.c.l.b16 %v897
        %v936 = vunpack.c.l.b16 %v898
        %v937 = vunpack.c.l.b16 %v899
        %v938 = vunpack.c.l.b16 %v900
        %v939 = vunpack.c.l.b16 %v901
        %v940 = vunpack.c.l.b16 %v902
        %v941 = vunpack.c.l.b16 %v903
        %v942 = vpack.c.b16 %v927, %v926
        %v943 = vpack.c.b16 %v929, %v928
        %v944 = vpack.c.b16 %v931, %v930
        %v945 = vpack.c.b16 %v933, %v932
        %v946 = vpack.c.b16 %v935, %v934
        %v947 = vpack.c.b16 %v937, %v936
        %v948 = vpack.c.b16 %v939, %v938
        %v949 = vpack.c.b16 %v941, %v940
        %958 = vmatpush.bf16.msra.mxu0 %v949
        %959 = vmatpush.bf16.msra.mxu0 %v948
        %960 = vmatpush.bf16.msra.mxu0 %v947
        %961 = vmatpush.bf16.msra.mxu0 %v946
        %962 = vmatpush.bf16.msra.mxu0 %v945
        %963 = vmatpush.bf16.msra.mxu0 %v944
        %964 = vmatpush.bf16.msra.mxu0 %v943
        %965 = vmatpush.bf16.msra.mxu0 %v942
        %966 = vmatmul.bf16.gmra.mxu0 %v905
        %v967 = vpop.f32.mrf.mxu0
        %v968 = vadd.f32 %v909, %v967
        %v969 = vpop.f32.mrf.mxu0
        %v970 = vadd.f32 %v909, %v969
        %971 = vmatmul.bf16.gmra.mxu0 %v906
        %v972 = vpop.f32.mrf.mxu0
        %v973 = vadd.f32 %v909, %v972
        %v974 = vpop.f32.mrf.mxu0
        %v975 = vadd.f32 %v909, %v974
        %976 = vmatmul.bf16.gmra.mxu0 %v907
        %v977 = vpop.f32.mrf.mxu0
        %v978 = vadd.f32 %v909, %v977
        %v979 = vpop.f32.mrf.mxu0
        %v980 = vadd.f32 %v909, %v979
        %981 = vmatmul.bf16.gmra.mxu0 %v908
        %v982 = vpop.f32.mrf.mxu0
        %v983 = vadd.f32 %v909, %v982
        %v984 = vpop.f32.mrf.mxu0
        %v985 = vadd.f32 %v909, %v984
        %986 = vdwg.mxu0
        %v987 = vmax.f32 %v968, 0.0
        %v988 = vmax.f32 %v970, 0.0
        %v989 = vmax.f32 %v973, 0.0
        %v990 = vmax.f32 %v975, 0.0
        %v991 = vmax.f32 %v978, 0.0
        %v992 = vmax.f32 %v980, 0.0
        %v993 = vmax.f32 %v983, 0.0
        %v994 = vmax.f32 %v985, 0.0
        %s995 = scalar_lea.vmem [#allocation5], 448
        %v996 = vld [vmem:[%s995] sm:$0xf]
        %v997 = vld [vmem:[%s995 + $0x4] sm:$0xf]
        %v998 = vld [vmem:[%s995 + $0x8] sm:$0xf]
        %v999 = vld [vmem:[%s995 + $0xc] sm:$0xf]
        %v1000 = vld [vmem:[%s995 + $0x10] sm:$0xf]
        %v1001 = vld [vmem:[%s995 + $0x14] sm:$0xf]
        %v1002 = vld [vmem:[%s995 + $0x18] sm:$0xf]
        %v1003 = vld [vmem:[%s995 + $0x1c] sm:$0xf]
        %v1004 = vld [vmem:[%s995 + $0x20] sm:$0xf]
        %v1005 = vld [vmem:[%s995 + $0x24] sm:$0xf]
        %v1006 = vld [vmem:[%s995 + $0x28] sm:$0xf]
        %v1007 = vld [vmem:[%s995 + $0x2c] sm:$0xf]
        %v1008 = vld [vmem:[%s995 + $0x30] sm:$0xf]
        %v1009 = vld [vmem:[%s995 + $0x34] sm:$0xf]
        %v1010 = vld [vmem:[%s995 + $0x38] sm:$0xf]
        %v1011 = vld [vmem:[%s995 + $0x3c] sm:$0xf]
        %v1012 = vld [vmem:[#allocation7 + $0x7] sm:$0x1]
        %v1013 = vpack.c.bf16 %v988, %v987
        %v1014 = vpack.c.bf16 %v990, %v989
        %v1015 = vpack.c.bf16 %v992, %v991
        %v1016 = vpack.c.bf16 %v994, %v993
        %v1017 = vperm.slane %v1012, 0
        %v1034 = vunpack.c.l.b16 %v996
        %v1035 = vunpack.c.l.b16 %v997
        %v1036 = vunpack.c.l.b16 %v998
        %v1037 = vunpack.c.l.b16 %v999
        %v1038 = vunpack.c.l.b16 %v1000
        %v1039 = vunpack.c.l.b16 %v1001
        %v1040 = vunpack.c.l.b16 %v1002
        %v1041 = vunpack.c.l.b16 %v1003
        %v1042 = vunpack.c.l.b16 %v1004
        %v1043 = vunpack.c.l.b16 %v1005
        %v1044 = vunpack.c.l.b16 %v1006
        %v1045 = vunpack.c.l.b16 %v1007
        %v1046 = vunpack.c.l.b16 %v1008
        %v1047 = vunpack.c.l.b16 %v1009
        %v1048 = vunpack.c.l.b16 %v1010
        %v1049 = vunpack.c.l.b16 %v1011
        %v1050 = vpack.c.b16 %v1035, %v1034
        %v1051 = vpack.c.b16 %v1037, %v1036
        %v1052 = vpack.c.b16 %v1039, %v1038
        %v1053 = vpack.c.b16 %v1041, %v1040
        %v1054 = vpack.c.b16 %v1043, %v1042
        %v1055 = vpack.c.b16 %v1045, %v1044
        %v1056 = vpack.c.b16 %v1047, %v1046
        %v1057 = vpack.c.b16 %v1049, %v1048
        %1066 = vmatpush.bf16.msra.mxu0 %v1057
        %1067 = vmatpush.bf16.msra.mxu0 %v1056
        %1068 = vmatpush.bf16.msra.mxu0 %v1055
        %1069 = vmatpush.bf16.msra.mxu0 %v1054
        %1070 = vmatpush.bf16.msra.mxu0 %v1053
        %1071 = vmatpush.bf16.msra.mxu0 %v1052
        %1072 = vmatpush.bf16.msra.mxu0 %v1051
        %1073 = vmatpush.bf16.msra.mxu0 %v1050
        %1074 = vmatmul.bf16.gmra.mxu0 %v1013
        %v1075 = vpop.f32.mrf.mxu0
        %v1076 = vadd.f32 %v1017, %v1075
        %v1077 = vpop.f32.mrf.mxu0
        %v1078 = vadd.f32 %v1017, %v1077
        %1079 = vmatmul.bf16.gmra.mxu0 %v1014
        %v1080 = vpop.f32.mrf.mxu0
        %v1081 = vadd.f32 %v1017, %v1080
        %v1082 = vpop.f32.mrf.mxu0
        %v1083 = vadd.f32 %v1017, %v1082
        %1084 = vmatmul.bf16.gmra.mxu0 %v1015
        %v1085 = vpop.f32.mrf.mxu0
        %v1086 = vadd.f32 %v1017, %v1085
        %v1087 = vpop.f32.mrf.mxu0
        %v1088 = vadd.f32 %v1017, %v1087
        %1089 = vmatmul.bf16.gmra.mxu0 %v1016
        %v1090 = vpop.f32.mrf.mxu0
        %v1091 = vadd.f32 %v1017, %v1090
        %v1092 = vpop.f32.mrf.mxu0
        %v1093 = vadd.f32 %v1017, %v1092
        %1094 = vdwg.mxu0
        %v1095 = vmax.f32 %v1076, 0.0
        %v1096 = vmax.f32 %v1078, 0.0
        %v1097 = vmax.f32 %v1081, 0.0
        %v1098 = vmax.f32 %v1083, 0.0
        %v1099 = vmax.f32 %v1086, 0.0
        %v1100 = vmax.f32 %v1088, 0.0
        %v1101 = vmax.f32 %v1091, 0.0
        %v1102 = vmax.f32 %v1093, 0.0
        %s1103 = scalar_lea.vmem %s221, 64 [#allocation8]
        %1104 = vst [vmem:[%s1103] sm:$0xff] %v1095
        %1105 = vst [vmem:[%s1103 + $0x8] sm:$0xff] %v1096
        %1106 = vst [vmem:[%s1103 + $0x10] sm:$0xff] %v1097
        %1107 = vst [vmem:[%s1103 + $0x18] sm:$0xff] %v1098
        %1108 = vst [vmem:[%s1103 + $0x20] sm:$0xff] %v1099
        %1109 = vst [vmem:[%s1103 + $0x28] sm:$0xff] %v1100
        %1110 = vst [vmem:[%s1103 + $0x30] sm:$0xff] %v1101
        %1111 = vst [vmem:[%s1103 + $0x38] sm:$0xff] %v1102
        %s1112 = sand.u32 %s97, 1
        %s1113 = scalar_lea.sflag [#allocation4], %s1112
        %s1114 = sand.u32 %s97, 1
        %s1115 = smul.addr %s1114, 128
        %s1116 = scalar_lea.vmem [#allocation8], %s1115
        // Predicated region
        $region45: #{tpu_custom_call.1} parent=31 // pred_check
          %p1117 = pneg %p107
        $region46: #{tpu_custom_call.1} parent=31 // pred_check_branch
          %1119 = sbr.rel (%p1117) target = $region48
        $region47: #{tpu_custom_call.1} parent=31 // pred_region
          #allocation10 [shape = 'u32[6]{0}', space=smem, size = 0x18, scoped, tag = 'DMA stride descriptor']
          %s1120 = smul.u32 8, %s21
          %1122 = vsyncadd %s1113, 0
          %s1123 = smul.addr %s1120, 8
          %s1124 = scalar_lea.hbm %s3, %s1123
          %s1126 = sshll.u32 1, 14
          %s1127 = sxor.u32 4294967295, %s1126
          %s1130 = sshll.u32 7, 18
          %s1131 = sxor.u32 4294967295, %s1130
          %s1132 = sand.u32 0, %s1131
          %s1134 = sor.u32 %s1132, 0
          %s1135 = sshll.u32 %s1116, 4
          %s1136 = int_to_ptr.vmem [resolvable:$true] %s1135
          %s1137 = sshll.u32 %s1124, 4
          %s1138 = int_to_ptr.hbm [resolvable:$true] %s1137
          %1144 = sst [smem:[#allocation10]] 1024
          %s1145 = scalar_lea.smem [#allocation10], 1
          %1146 = sst [smem:[%s1145]] 2048
          %s1147 = scalar_lea.smem [#allocation10], 2
          %1148 = sst [smem:[%s1147]] 8
          %s1149 = scalar_lea.smem [#allocation10], 3
          %1150 = sst [smem:[%s1149]] 128
          %s1151 = scalar_lea.smem [#allocation10], 4
          %1152 = sst [smem:[%s1151]] 128
          %s1153 = scalar_lea.smem [#allocation10], 5
          %1154 = sst [smem:[%s1153]] 8
          %1156 = dma.general %s1136, 2048, %s1138, %s1113, [#allocation9], [#allocation10], %s1134, 0
        $region48: #{tpu_custom_call.1} parent=31 // pred_fallthru
          _
      $region32: #{tpu_custom_call.1} parent=5 // pred_fallthru
        _
      %p1157 = scmp.le.s32.totalorder 2, %s16
      // Predicated region
      $region49: #{tpu_custom_call.1} parent=5 // pred_check
        %p1158 = pneg %p1157
      $region50: #{tpu_custom_call.1} parent=5 // pred_check_branch
        %1160 = sbr.rel (%p1158) target = $region52
      $region51: #{tpu_custom_call.1} parent=5 // pred_region
        %s1161 = ssub.s32 %s16, 2
        // Predicated region
        $region53: #{tpu_custom_call.1} parent=51 // pred_check
          %p1162 = pneg %p113
        $region54: #{tpu_custom_call.1} parent=51 // pred_check_branch
          %1164 = sbr.rel (%p1162) target = $region56
        $region55: #{tpu_custom_call.1} parent=51 // pred_region
          %s1165 = sand.u32 %s98, 1
          %s1166 = scalar_lea.sflag [#allocation4], %s1165
          %s1167 = sand.u32 %s98, 1
          %s1168 = smul.addr %s1167, 128
          %s1169 = scalar_lea.vmem [#allocation8], %s1168
          %1171 = dma.done %s1166, 2048
        $region56: #{tpu_custom_call.1} parent=51 // pred_fallthru
          _
      $region52: #{tpu_custom_call.1} parent=5 // pred_fallthru
        _
    $region6: #{tpu_custom_call.1} parent=1 // loop_footer
      %s20 = sadd.s32 1, %s16
    $region7: #{tpu_custom_call.1} parent=1 // loop_footer_branch
      %15 = sbr.rel target = $region3
    $region8: #{tpu_custom_call.1} parent=1 // loop_exit
      _
    %1172 = vsyncpa [#allocation3], 1
    %s1173 = scalar_lea.sflag [#allocation3], 1
    %1174 = vsyncpa %s1173, 1
    %1175 = vsyncpa [#allocation6], 1
    %1176 = vsyncpa [#allocation4], 1
    %s1177 = scalar_lea.sflag [#allocation4], 1
    %1178 = vsyncpa %s1177, 1

</llo_original>
